<compile_context>
chip_gen: v5e
topology: v5e:2x2
jax: 0.10.0
libtpu: 0.0.40
codegen_flags: <defaults>
</compile_context>

<pallas_src>
import jax
import jax.numpy as jnp
from jax import lax
from jax.experimental import pallas as pl
from jax.experimental.pallas import tpu as pltpu

_EPS = 1e-12  # matches torch.nn.functional.normalize default eps


def _angle_linear_kernel(x_ref, w_ref, xinv_ref, winv_ref, o_ref, acc_ref):
    k = pl.program_id(2)

    @pl.when(k == 0)
    def _():
        acc_ref[...] = jnp.zeros_like(acc_ref)

    # MXU matmul on the raw (possibly bf16) operands; f32 accumulation.
    acc_ref[...] += jnp.dot(x_ref[...], w_ref[...],
                            preferred_element_type=jnp.float32)

    @pl.when(k == pl.num_programs(2) - 1)
    def _():
        # Post-matmul normalization: B*C multiplies instead of normalizing
        # the (much larger) operands.  Norms are precomputed in the wrapper.
        cos_theta = acc_ref[...] * xinv_ref[...] * winv_ref[...]
        o_ref[...] = jnp.clip(cos_theta, -1.0, 1.0).astype(o_ref.dtype)


def _round_up(v, m):
    return ((v + m - 1) // m) * m


def _cdiv(a, b):
    return (a + b - 1) // b


def _vmem_capacity_bytes():
    try:
        return int(pltpu.get_tpu_info().vmem_capacity_bytes)
    except Exception:
        return 64 << 20  # conservative: v7x per-TensorCore physical VMEM


def angle_simple_linear(x, weight):
    """x: [B, in_features], weight: [in_features, out_features] -> [B, out_features]."""
    B, D = x.shape
    D2, C = weight.shape
    assert D == D2, "in_features mismatch"
    out_dtype = jnp.result_type(x.dtype, weight.dtype)

    isz_x = jnp.dtype(x.dtype).itemsize
    isz_w = jnp.dtype(weight.dtype).itemsize
    isz_o = jnp.dtype(out_dtype).itemsize

    # --- precompute inverse norms (f32) once per call -----------------------
    # rsqrt(max(ss, eps^2)) == 1 / max(||v||, eps)  (EUP rsqrt, matches torch)
    x_sumsq = jnp.sum(jnp.square(x.astype(jnp.float32)), axis=1, keepdims=True)
    x_inv = lax.rsqrt(jnp.maximum(x_sumsq, _EPS * _EPS))            # [B, 1]
    w_sumsq = jnp.sum(jnp.square(weight.astype(jnp.float32)), axis=0, keepdims=True)
    w_inv = lax.rsqrt(jnp.maximum(w_sumsq, _EPS * _EPS))            # [1, C]

    # --- tile sizes ----------------------------------------------------------
    tn = min(_round_up(C, 128), 512)   # lane-dense output, high arith. intensity
    tm = min(_round_up(B, 8), 256)     # up to full MXU row width on v6e/v7x

    cap = _vmem_capacity_bytes()
    budget = int(cap * 0.7)

    def footprint(tk):
        # double-buffered x, w, out tiles + f32 accumulator + norm vectors
        return (2 * tm * tk * isz_x + 2 * tk * tn * isz_w
                + 2 * tm * tn * isz_o + tm * tn * 4
                + 2 * tm * 4 + 2 * tn * 4)

    if footprint(D) <= budget:
        tk, Dp, gk = D, D, 1
    else:
        # Split the reduction (K) axis so full-size MXU tiles still fit VMEM.
        fixed = 2 * tm * tn * isz_o + tm * tn * 4 + 2 * tm * 4 + 2 * tn * 4
        avail = max(budget - fixed, 0)
        per_k = 2 * (tm * isz_x + tn * isz_w)
        tk_max = max(((avail // per_k) // 128) * 128, 128)
        gk = _cdiv(D, tk_max)
        tk = _round_up(_cdiv(D, gk), 128)
        Dp = tk * gk

    Bp = _round_up(B, tm)
    Cp = _round_up(C, tn)

    # --- pad to tile multiples (zero padding is norm/matmul safe) -----------
    if Bp != B or Dp != D:
        x = jnp.pad(x, ((0, Bp - B), (0, Dp - D)))
    if Dp != D or Cp != C:
        weight = jnp.pad(weight, ((0, Dp - D), (0, Cp - C)))
    if Bp != B:
        x_inv = jnp.pad(x_inv, ((0, Bp - B), (0, 0)))
    if Cp != C:
        w_inv = jnp.pad(w_inv, ((0, 0), (0, Cp - C)))

    gm = Bp // tm
    gn = Cp // tn

    # Pick the grid order that re-streams the least HBM traffic:
    #   batch-outer re-reads W (gm-1) extra times; C-outer re-reads x (gn-1) times.
    batch_outer = (gm - 1) * C * isz_w <= (gn - 1) * B * isz_x
    if batch_outer:
        grid = (gm, gn, gk)
        x_map = lambda i, j, k: (i, k)
        w_map = lambda i, j, k: (k, j)
        xi_map = lambda i, j, k: (i, 0)
        wi_map = lambda i, j, k: (0, j)
        o_map = lambda i, j, k: (i, j)
    else:
        grid = (gn, gm, gk)
        x_map = lambda j, i, k: (i, k)
        w_map = lambda j, i, k: (k, j)
        xi_map = lambda j, i, k: (i, 0)
        wi_map = lambda j, i, k: (0, j)
        o_map = lambda j, i, k: (i, j)

    vmem_limit = int(min(cap, max(32 << 20, footprint(tk) + (8 << 20))))

    out = pl.pallas_call(
        _angle_linear_kernel,
        out_shape=jax.ShapeDtypeStruct((Bp, Cp), out_dtype),
        grid_spec=pltpu.PrefetchScalarGridSpec(
            num_scalar_prefetch=0,
            grid=grid,
            in_specs=[
                pl.BlockSpec((tm, tk), x_map),    # x tile
                pl.BlockSpec((tk, tn), w_map),    # weight tile
                pl.BlockSpec((tm, 1), xi_map),    # precomputed row inv-norms
                pl.BlockSpec((1, tn), wi_map),    # precomputed col inv-norms
            ],
            out_specs=pl.BlockSpec((tm, tn), o_map),
            scratch_shapes=[pltpu.VMEM((tm, tn), jnp.float32)],   # f32 accumulator
        ),
        compiler_params=pltpu.CompilerParams(
            dimension_semantics=("parallel", "parallel", "arbitrary"),
            vmem_limit_bytes=vmem_limit,
        ),
    )(x, weight, x_inv, w_inv)

    return out[:B, :C]


def init_weight(key, in_features, out_features):
    """Deterministic synthetic init mirroring the PyTorch __init__:
    uniform(-1, 1), renorm columns to max-norm 1e-5, then * 1e5."""
    w = jax.random.uniform(key, (in_features, out_features),
                           minval=-1.0, maxval=1.0, dtype=jnp.float32)
    col_norm = jnp.sqrt(jnp.sum(w * w, axis=0, keepdims=True))
    scale = jnp.where(col_norm > 1e-5, 1e-5 / (col_norm + 1e-7), 1.0)
    return w * scale * 1e5


if __name__ == "__main__":
    key = jax.random.PRNGKey(0)
    kx, kw = jax.random.split(key)

    batch = 8
    in_features = 32
    out_features = 16

    x = jax.random.normal(kx, (batch, in_features), dtype=jnp.float32)
    weight = init_weight(kw, in_features, out_features)

    out = jax.block_until_ready(angle_simple_linear(x, weight))

    # Reference check in plain JAX (same math as the PyTorch module).
    x_n = x / jnp.maximum(jnp.linalg.norm(x, axis=1, keepdims=True), _EPS)
    w_n = weight / jnp.maximum(jnp.linalg.norm(weight, axis=0, keepdims=True), _EPS)
    ref = jnp.clip(x_n @ w_n, -1.0, 1.0)

    assert out.shape == (batch, out_features)
    assert jnp.max(jnp.abs(out - ref)) < 1e-5

    print("KERNEL_OK")
</pallas_src>

<mosaic_0001>
module attributes {stable_mosaic.version = 11 : i64} {
  func.func @_angle_linear_kernel(%arg0: i32, %arg1: i32, %arg2: i32, %arg3: memref<8x32xf32, #tpu.memory_space<vmem>>, %arg4: memref<32x128xf32, #tpu.memory_space<vmem>>, %arg5: memref<8x1xf32, #tpu.memory_space<vmem>>, %arg6: memref<1x128xf32, #tpu.memory_space<vmem>>, %arg7: memref<8x128xf32, #tpu.memory_space<vmem>>, %arg8: memref<8x128xf32, #tpu.memory_space<vmem>>) attributes {dimension_semantics = [#tpu.dimension_semantics<parallel>, #tpu.dimension_semantics<parallel>, #tpu.dimension_semantics<arbitrary>], iteration_bounds = array<i64: 1, 1, 1>, scalar_prefetch = 0 : i64, scratch_operands = 1 : i64, tpu.core_type = #tpu.core_type<tc>, window_params = [{transform_indices = @transform_0, window_bounds = array<i64: 8, 32>}, {transform_indices = @transform_1, window_bounds = array<i64: 32, 128>}, {transform_indices = @transform_2, window_bounds = array<i64: 8, 1>}, {transform_indices = @transform_3, window_bounds = array<i64: 1, 128>}, {transform_indices = @transform_4, window_bounds = array<i64: 8, 128>}]} {
    %c0_i32 = arith.constant 0 : i32
    %0 = arith.cmpi eq, %arg2, %c0_i32 : i32
    %1 = arith.extui %0 : i1 to i32
    %c0_i32_0 = arith.constant 0 : i32
    %2 = arith.cmpi ne, %1, %c0_i32_0 : i32
    scf.if %2 {
      %cst_10 = arith.constant 0.000000e+00 : f32
      %12 = vector.broadcast %cst_10 : f32 to vector<8x128xf32>
      %c0_11 = arith.constant 0 : index
      %c0_12 = arith.constant 0 : index
      %13 = vector.load %arg8[%c0_11, %c0_12] : memref<8x128xf32, #tpu.memory_space<vmem>>, vector<8x128xf32>
      tpu.vector_store %arg8[%c0_11, %c0_12], %12 {strides = array<i32>} : memref<8x128xf32, #tpu.memory_space<vmem>>, vector<8x128xf32>,
    } else {
    }
    %c0 = arith.constant 0 : index
    %c0_1 = arith.constant 0 : index
    %3 = vector.load %arg8[%c0, %c0_1] : memref<8x128xf32, #tpu.memory_space<vmem>>, vector<8x128xf32>
    %c0_2 = arith.constant 0 : index
    %c0_3 = arith.constant 0 : index
    %4 = vector.load %arg3[%c0_2, %c0_3] : memref<8x32xf32, #tpu.memory_space<vmem>>, vector<8x32xf32>
    %c0_4 = arith.constant 0 : index
    %c0_5 = arith.constant 0 : index
    %5 = vector.load %arg4[%c0_4, %c0_5] : memref<32x128xf32, #tpu.memory_space<vmem>>, vector<32x128xf32>
    %cst = arith.constant dense<0.000000e+00> : vector<8x128xf32>
    %6 = tpu.matmul %4, %5, %cst {dimension_numbers = #tpu.dot_dimension_numbers<[1], [0], [0], [1], [0, 0, 1, 1], [], []>} : vector<8x32xf32>, vector<32x128xf32>, vector<8x128xf32> -> vector<8x128xf32>
    %7 = arith.addf %3, %6 : vector<8x128xf32>
    %c0_6 = arith.constant 0 : index
    %c0_7 = arith.constant 0 : index
    %8 = vector.load %arg8[%c0_6, %c0_7] : memref<8x128xf32, #tpu.memory_space<vmem>>, vector<8x128xf32>
    tpu.vector_store %arg8[%c0_6, %c0_7], %7 {strides = array<i32>} : memref<8x128xf32, #tpu.memory_space<vmem>>, vector<8x128xf32>,
    %c0_i32_8 = arith.constant 0 : i32
    %9 = arith.cmpi eq, %arg2, %c0_i32_8 : i32
    %10 = arith.extui %9 : i1 to i32
    %c0_i32_9 = arith.constant 0 : i32
    %11 = arith.cmpi ne, %10, %c0_i32_9 : i32
    scf.if %11 {
      %c0_10 = arith.constant 0 : index
      %c0_11 = arith.constant 0 : index
      %12 = vector.load %arg8[%c0_10, %c0_11] : memref<8x128xf32, #tpu.memory_space<vmem>>, vector<8x128xf32>
      %c0_12 = arith.constant 0 : index
      %c0_13 = arith.constant 0 : index
      %13 = vector.load %arg5[%c0_12, %c0_13] : memref<8x1xf32, #tpu.memory_space<vmem>>, vector<8x1xf32>
      %14 = vector.broadcast %13 : vector<8x1xf32> to vector<8x128xf32>
      %15 = arith.mulf %12, %14 : vector<8x128xf32>
      %c0_14 = arith.constant 0 : index
      %c0_15 = arith.constant 0 : index
      %16 = vector.load %arg6[%c0_14, %c0_15] : memref<1x128xf32, #tpu.memory_space<vmem>>, vector<1x128xf32>
      %17 = vector.broadcast %16 : vector<1x128xf32> to vector<8x128xf32>
      %18 = arith.mulf %15, %17 : vector<8x128xf32>
      %cst_16 = arith.constant -1.000000e+00 : f32
      %cst_17 = arith.constant 1.000000e+00 : f32
      %19 = vector.broadcast %cst_16 : f32 to vector<8x128xf32>
      %20 = arith.maximumf %19, %18 : vector<8x128xf32>
      %21 = vector.broadcast %cst_17 : f32 to vector<8x128xf32>
      %22 = arith.minimumf %21, %20 : vector<8x128xf32>
      %c0_18 = arith.constant 0 : index
      %c0_19 = arith.constant 0 : index
      %23 = vector.load %arg7[%c0_18, %c0_19] : memref<8x128xf32, #tpu.memory_space<vmem>>, vector<8x128xf32>
      tpu.vector_store %arg7[%c0_18, %c0_19], %22 {strides = array<i32>} : memref<8x128xf32, #tpu.memory_space<vmem>>, vector<8x128xf32>,
    } else {
    }
    return
  }
  func.func @transform_0(%arg0: i32, %arg1: i32, %arg2: i32) -> (i32, i32) {
    %c0_i32 = arith.constant 0 : i32
    return %arg0, %arg2 : i32, i32
  }
  func.func @transform_1(%arg0: i32, %arg1: i32, %arg2: i32) -> (i32, i32) {
    %c0_i32 = arith.constant 0 : i32
    return %arg2, %arg1 : i32, i32
  }
  func.func @transform_2(%arg0: i32, %arg1: i32, %arg2: i32) -> (i32, i32) {
    %c0_i32 = arith.constant 0 : i32
    %c0_i32_0 = arith.constant 0 : i32
    return %arg0, %c0_i32 : i32, i32
  }
  func.func @transform_3(%arg0: i32, %arg1: i32, %arg2: i32) -> (i32, i32) {
    %c0_i32 = arith.constant 0 : i32
    %c0_i32_0 = arith.constant 0 : i32
    return %c0_i32, %arg1 : i32, i32
  }
  func.func @transform_4(%arg0: i32, %arg1: i32, %arg2: i32) -> (i32, i32) {
    %c0_i32 = arith.constant 0 : i32
    return %arg0, %arg1 : i32, i32
  }
}

</mosaic_0001>

<llo_original>
// kernel: tpu_custom_call.1
$region0: #{tpu_custom_call.1}
  #allocation0 [shape = 'u32[]', space=smem, size = 0x4, offset = 0x4, fixed_abs, tag = 'smem constant byte address 0x4 - core index']
  #allocation1 [shape = 'u32[72,128]{1,0:T(1,128)}', space=vmem, size = 0x9000, scoped, tag = 'internal scratch']
  #allocation2 [shape = 'f32[8,128]{1,0:T(8,128)}', space=vmem, size = 0x1000, scoped, tag = 'scratch operand']
  %s0 = inlined_call_operand.vmem [shape: f32[8,32], index: 0, kind: input, shape index: {}]
  %s1 = inlined_call_operand.hbm [shape: f32[32,128], index: 1, kind: input, shape index: {}]
  %s2 = inlined_call_operand.vmem [shape: f32[8,1], index: 2, kind: input, shape index: {}]
  %s3 = inlined_call_operand.vmem [shape: f32[1,128], index: 3, kind: input, shape index: {}]
  %s4 = inlined_call_operand.hbm [shape: f32[8,128], index: 4, kind: output, shape index: {}]
  %s5 = sld [smem:[#allocation0]]
  $region38: #{tpu_custom_call.1} parent=0
    _
  %s7 = ssub.s32 1, %s5
  %s8 = scalar_select 0, %s7, %s5
  $region1: #{tpu_custom_call.1} parent=0
    #allocation3 [shape = 'u8[16384]{0}', space=vmem, size = 0x4000, scoped, tag = 'input window, operand 1, single buffered']
    #allocation4 [shape = 's32[1]{0}', space=sflag, size = 0x4, scoped, tag = 'scoped memory for tpu_custom_call.1']
    #allocation5 [shape = 's32[1]{0}', space=sflag, size = 0x4, scoped, tag = 'scoped memory for tpu_custom_call.1']
    #allocation6 [shape = 'u8[4096]{0}', space=vmem, size = 0x1000, scoped, tag = 'output window, operand 0, single buffered']
    %9 = vsyncpa [#allocation4], 0
    %10 = vsyncpa [#allocation5], 0
    // Predicated region
    $region2: #{tpu_custom_call.1} parent=1 // pred_check
      _
    $region3: #{tpu_custom_call.1} parent=1 // pred_check_branch
      %12 = sbr.rel (0) target = $region5
    $region4: #{tpu_custom_call.1} parent=1 // pred_region
      _
    $region5: #{tpu_custom_call.1} parent=1 // pred_fallthru
      _
    // Predicated region
    $region6: #{tpu_custom_call.1} parent=1 // pred_check
      _
    $region7: #{tpu_custom_call.1} parent=1 // pred_check_branch
      %14 = sbr.rel (0) target = $region9
    $region8: #{tpu_custom_call.1} parent=1 // pred_region
      %16 = vsyncadd [#allocation4], 0
      %s17 = sshll.u32 %s1, 4
      %s18 = int_to_ptr.hbm [resolvable:$true] %s17
      %s19 = sshll.u32 [#allocation3], 4
      %s20 = int_to_ptr.vmem [resolvable:$true] %s19
      %25 = dma.hbm_to_vmem [thread:$0]  %s18, 512, %s20, [#allocation4], 128, 128, 8
    $region9: #{tpu_custom_call.1} parent=1 // pred_fallthru
      _
    // Predicated region
    $region10: #{tpu_custom_call.1} parent=1 // pred_check
      _
    $region11: #{tpu_custom_call.1} parent=1 // pred_check_branch
      %27 = sbr.rel (0) target = $region13
    $region12: #{tpu_custom_call.1} parent=1 // pred_region
      _
    $region13: #{tpu_custom_call.1} parent=1 // pred_fallthru
      _
    // Predicated region
    $region14: #{tpu_custom_call.1} parent=1 // pred_check
      _
    $region15: #{tpu_custom_call.1} parent=1 // pred_check_branch
      %29 = sbr.rel (0) target = $region17
    $region16: #{tpu_custom_call.1} parent=1 // pred_region
      _
    $region17: #{tpu_custom_call.1} parent=1 // pred_fallthru
      _
    // Predicated region
    $region18: #{tpu_custom_call.1} parent=1 // pred_check
      _
    $region19: #{tpu_custom_call.1} parent=1 // pred_check_branch
      %31 = sbr.rel (0) target = $region21
    $region20: #{tpu_custom_call.1} parent=1 // pred_region
      %33 = dma.done [#allocation4], 512
    $region21: #{tpu_custom_call.1} parent=1 // pred_fallthru
      _
    %p34 = scmp.eq.s32.totalorder 0, 0
    // Predicated region
    $region22: #{tpu_custom_call.1} parent=1 // pred_check
      %p35 = pneg %p34
    $region23: #{tpu_custom_call.1} parent=1 // pred_check_branch
      %37 = sbr.rel (%p35) target = $region25
    $region24: #{tpu_custom_call.1} parent=1 // pred_region
      %38 = vst [vmem:[#allocation2] sm:$0xff] 0.0
    $region25: #{tpu_custom_call.1} parent=1 // pred_fallthru
      _
    %v39 = vld [vmem:[#allocation2] sm:$0xff]
    %v40 = vld [vmem:[%s0] sm:$0xff]
    %v41 = vld [vmem:[#allocation3] sm:$0xff]
    %v42 = vld [vmem:[#allocation3 + $0x8] sm:$0xff]
    %v43 = vld [vmem:[#allocation3 + $0x10] sm:$0xff]
    %v44 = vld [vmem:[#allocation3 + $0x18] sm:$0xff]
    %vm45 = vcmask 261120
    %v47 = vsel %vm45, %v40, 0
    %49 = vmatpush.msra.mxu0 0.0
    %50 = vmatpush.msra.mxu0 0.0
    %51 = vmatpush.msra.mxu0 0.0
    %52 = vmatpush.msra.mxu0 0.0
    %53 = vmatpush.msra.mxu0 0.0
    %54 = vmatpush.msra.mxu0 0.0
    %55 = vmatpush.msra.mxu0 0.0
    %56 = vmatpush.msra.mxu0 0.0
    %57 = vmatpush.msra.mxu0 0.0
    %58 = vmatpush.msra.mxu0 0.0
    %59 = vmatpush.msra.mxu0 0.0
    %60 = vmatpush.msra.mxu0 0.0
    %61 = vmatpush.msra.mxu0 %v44
    %62 = vmatpush.msra.mxu0 %v43
    %63 = vmatpush.msra.mxu0 %v42
    %64 = vmatpush.msra.mxu0 %v41
    %65 = vmatmul.f32.gmra.mxu0 %v47
    %v66 = vpop.f32.mrf.mxu0
    %v67 = vadd.f32 0.0, %v66
    %68 = vdwg.mxu0
    %v69 = vadd.f32 %v39, %v67
    %70 = vst [vmem:[#allocation2] sm:$0xff] %v69
    // Predicated region
    $region26: #{tpu_custom_call.1} parent=1 // pred_check
      %p71 = pneg %p34
    $region27: #{tpu_custom_call.1} parent=1 // pred_check_branch
      %73 = sbr.rel (%p71) target = $region29
    $region28: #{tpu_custom_call.1} parent=1 // pred_region
      %v74 = vld [vmem:[#allocation2] sm:$0xff]
      %v75 = vld [vmem:[%s2] sm:$0xff]
      %77 = vset.pattern.permute.xlu0 0
      %78 = vperm.xlu0 %77, %v75
      %v79 = vpop.permute.xlu0 %78
      %v81 = vmul.f32 %v74, %v79
      %v82 = vld [vmem:[%s3] sm:$0x1]
      %v84 = vperm.slane %v82, 0
      %v86 = vmul.f32 %v81, %v84
      %v87 = vmax.f32 %v86, -1.0
      %v88 = vmin.f32 %v87, 1.0
      %89 = vst [vmem:[#allocation6] sm:$0xff] %v88
    $region29: #{tpu_custom_call.1} parent=1 // pred_fallthru
      _
    // Predicated region
    $region30: #{tpu_custom_call.1} parent=1 // pred_check
      _
    $region31: #{tpu_custom_call.1} parent=1 // pred_check_branch
      %91 = sbr.rel (0) target = $region33
    $region32: #{tpu_custom_call.1} parent=1 // pred_region
      %93 = vsyncadd [#allocation5], 0
      %s95 = sshll.u32 [#allocation6], 4
      %s96 = int_to_ptr.vmem [resolvable:$true] %s95
      %s97 = sshll.u32 %s4, 4
      %s98 = int_to_ptr.hbm [resolvable:$true] %s97
      %100 = dma.vmem_to_hbm [thread:$0]  %s96, 128, %s98, [#allocation5]
    $region33: #{tpu_custom_call.1} parent=1 // pred_fallthru
      _
    // Predicated region
    $region34: #{tpu_custom_call.1} parent=1 // pred_check
      _
    $region35: #{tpu_custom_call.1} parent=1 // pred_check_branch
      %102 = sbr.rel (0) target = $region37
    $region36: #{tpu_custom_call.1} parent=1 // pred_region
      %104 = dma.done [#allocation5], 128
    $region37: #{tpu_custom_call.1} parent=1 // pred_fallthru
      _
    %105 = vsyncpa [#allocation4], 1
    %106 = vsyncpa [#allocation5], 1

</llo_original>
